<compile_context>
chip_gen: v7x
topology: tpu7x:2x2x1
jax: 0.10.0
libtpu: 0.0.40
codegen_flags: <defaults>
</compile_context>

<pallas_src>
import jax
import jax.numpy as jnp
from jax.experimental import pallas as pl
from jax.experimental.pallas import tpu as pltpu


def sage_kernel(node_ref, hsrc_ref, e_ref, ws_ref, wnr_ref, wer_ref, b_ref,
                out_ref):
    """One node tile of GraphSAGE mean aggregation (nodes on the lane axis).

    node_ref : (D,    tn)  bf16  self features, transposed
    hsrc_ref : (D*S,  tn)  bf16  sampled neighbor features, (d, s) flattened
    e_ref    : (E*S,  tn)  bf16  sampled edge features, (e, s) flattened
    ws_ref   : (emb, D)    bf16  W_lin[:, :D]                   ("self" half)
    wnr_ref  : (emb, D*S)  bf16  repeat(W_lin[:, D:] / S, S)    (mean folded in)
    wer_ref  : (emb, E*S)  bf16  repeat(W_lin[:, D:] @ W_edge / S, S)
    b_ref    : (emb, 1)    f32   b_lin + W_lin[:, D:] @ b_edge
    out_ref  : (emb, tn)

    The mean over the S sampled neighbors is absorbed into the MXU contraction
    (replicated, pre-scaled weights), so no in-kernel reduction or f32 cast of
    the (D*S, tn) block is ever materialized.
    """
    acc = jnp.dot(ws_ref[...], node_ref[...],
                  preferred_element_type=jnp.float32)
    acc = acc + jnp.dot(wnr_ref[...], hsrc_ref[...],
                        preferred_element_type=jnp.float32)
    acc = acc + jnp.dot(wer_ref[...], e_ref[...],
                        preferred_element_type=jnp.float32)
    acc = acc + b_ref[...]
    out_ref[...] = jnp.maximum(acc, 0.0).astype(out_ref.dtype)


def graphsage_conv(node_feat, edge_feat, samp_src, samp_eid,
                   w_edge, b_edge, w_lin, b_lin, *,
                   tile_n=4096, compute_dtype=jnp.bfloat16,
                   out_dtype=jnp.bfloat16, transpose_output=True):
    """Pallas wrapper.

    node_feat : (N, D)   node features
    edge_feat : (M, E)   edge features
    samp_src  : (N, S)   src node id of each sampled in-edge per node
    samp_eid  : (N, S)   edge id of each sampled in-edge per node
    w_edge    : (D, E)   nn.Linear(edge_dim, node_dim) weight
    b_edge    : (D,)
    w_lin     : (emb, 2D) nn.Linear(2*node_dim, emb_dim) weight
    b_lin     : (emb,)
    Returns (N, emb) if transpose_output else (emb, N), dtype out_dtype.
    """
    N, D = node_feat.shape
    M, E = edge_feat.shape
    S = samp_src.shape[1]
    emb = w_lin.shape[0]

    # ---- tile / padding selection ------------------------------------------
    def rup(x, m):
        return ((x + m - 1) // m) * m

    n_lanes = rup(N, 128)
    tile = min(max(rup(tile_n, 128), 128), n_lanes)
    if n_lanes // tile < 2 and tile > 128:
        # keep at least 2 grid steps so both TensorCores on v7x get work
        tile = max(128, rup(tile // 2, 128))
    n_pad = rup(N, tile)
    grid = (n_pad // tile,)
    # TODO(synk): prefer an *even* grid on v7x megacore when N allows it.

    # ---- weight folding (tiny, f32) then cast to bf16 for the MXU ----------
    w_lin_f = jnp.asarray(w_lin, jnp.float32)
    ws = w_lin_f[:, :D]                                              # (emb, D)
    wn = w_lin_f[:, D:]                                              # (emb, D)
    wef = wn @ jnp.asarray(w_edge, jnp.float32)                      # (emb, E)
    bias = (jnp.asarray(b_lin, jnp.float32)
            + wn @ jnp.asarray(b_edge, jnp.float32)).reshape(emb, 1)  # (emb, 1)
    inv_s = 1.0 / S
    ws_c = ws.astype(compute_dtype)                                  # (emb, D)
    wn_rep = jnp.repeat(wn * inv_s, S, axis=1).astype(compute_dtype)   # (emb, D*S)
    wef_rep = jnp.repeat(wef * inv_s, S, axis=1).astype(compute_dtype)  # (emb, E*S)

    # ---- bf16 pre-transposed tables; gather straight into nodes-on-lanes ---
    node_t = jnp.asarray(node_feat, compute_dtype).T                 # (D, N)
    edge_t = jnp.asarray(edge_feat, compute_dtype).T                 # (E, M)
    node_t = jnp.pad(node_t, ((0, 0), (0, n_pad - N)))               # (D, n_pad)

    src_idx = jnp.pad(jnp.asarray(samp_src, jnp.int32),
                      ((0, n_pad - N), (0, 0))).T                    # (S, n_pad)
    eid_idx = jnp.pad(jnp.asarray(samp_eid, jnp.int32),
                      ((0, n_pad - N), (0, 0))).T                    # (S, n_pad)

    # Gather produces (D, S, n_pad) / (E, S, n_pad) directly (no big
    # transpose); collapsing the leading dims is a metadata-only reshape.
    hsrc = node_t[:, src_idx].reshape(D * S, n_pad)                  # (D*S, n_pad)
    e_g = edge_t[:, eid_idx].reshape(E * S, n_pad)                   # (E*S, n_pad)
    # TODO(synk): in-kernel gather from a VMEM-resident bf16 node table (via
    # scalar-prefetched indices) would remove the S-times-duplicated hsrc
    # materialization entirely; table must fit ~40-48 MiB on v7x (64 MiB VMEM)
    # vs ~90-100 MiB on v5e/v6e (128 MiB). Kept as plain-JAX graph glue here.

    # ---- VMEM budget: per-step traffic + pipeline headroom ------------------
    out_bytes = jnp.dtype(out_dtype).itemsize
    in_bytes = jnp.dtype(compute_dtype).itemsize
    per_step = tile * (D + D * S + E * S) * in_bytes + tile * emb * out_bytes
    vmem_limit = int(min(max(4 * per_step + (2 << 20), 16 << 20), 100 << 20))

    out_t = pl.pallas_call(
        sage_kernel,
        out_shape=jax.ShapeDtypeStruct((emb, n_pad), out_dtype),
        grid_spec=pltpu.PrefetchScalarGridSpec(
            num_scalar_prefetch=0,
            grid=grid,
            in_specs=[
                pl.BlockSpec((D, tile), lambda i: (0, i)),
                pl.BlockSpec((D * S, tile), lambda i: (0, i)),
                pl.BlockSpec((E * S, tile), lambda i: (0, i)),
                pl.BlockSpec((emb, D), lambda i: (0, 0)),
                pl.BlockSpec((emb, D * S), lambda i: (0, 0)),
                pl.BlockSpec((emb, E * S), lambda i: (0, 0)),
                pl.BlockSpec((emb, 1), lambda i: (0, 0)),
            ],
            out_specs=pl.BlockSpec((emb, tile), lambda i: (0, i)),
        ),
        compiler_params=pltpu.CompilerParams(
            dimension_semantics=("parallel",),
            vmem_limit_bytes=vmem_limit),
    )(node_t, hsrc, e_g, ws_c, wn_rep, wef_rep, bias)

    out_t = out_t[:, :N]                                             # (emb, N)
    return out_t.T if transpose_output else out_t


def reference(node_feat, h_src, e_samp, w_edge, b_edge, w_lin, b_lin):
    t_edge = jnp.einsum("nse,de->nsd", e_samp, w_edge) + b_edge
    msg = h_src + t_edge
    h_neigh = jnp.mean(msg, axis=1)
    h_concat = jnp.concatenate([node_feat, h_neigh], axis=1)
    return jax.nn.relu(h_concat @ w_lin.T + b_lin)


if __name__ == "__main__":
    key = jax.random.PRNGKey(0)
    k1, k2, k3, k4, k5, k6, k7 = jax.random.split(key, 7)

    # module hyper-params
    node_dim = 16
    edge_dim = 8
    emb_dim = 32
    num_samples = 8

    # synthetic graph: N nodes, M edges (small demo; tile splits to 128 -> grid 2)
    N = 256
    M = 1024

    node_feat = jax.random.normal(k1, (N, node_dim), jnp.float32)
    edge_feat = jax.random.normal(k2, (M, edge_dim), jnp.float32)
    edge_src = jax.random.randint(k3, (M,), 0, N)          # source node of each edge

    # nn.Linear shapes: weight (out, in), bias (out,)
    w_lin = jax.random.normal(k4, (emb_dim, 2 * node_dim), jnp.float32) * 0.1
    b_lin = jax.random.normal(k5, (emb_dim,), jnp.float32) * 0.1
    w_edge = jax.random.normal(k6, (node_dim, edge_dim), jnp.float32) * 0.1
    b_edge = jax.random.normal(k7, (node_dim,), jnp.float32) * 0.1

    # TODO(synk): DGL neighbor sampling (sample_neighbors with replacement) has
    # no Pallas equivalent; emulated as a deterministic random gather in plain
    # JAX (graph glue), producing per-node sampled edge / src-node ids.
    k8 = jax.random.fold_in(key, 123)
    samp_eid = jax.random.randint(k8, (N, num_samples), 0, M)   # (N, S) edge ids
    samp_src = edge_src[samp_eid]                               # (N, S) src node ids

    out = graphsage_conv(node_feat, edge_feat, samp_src, samp_eid,
                         w_edge, b_edge, w_lin, b_lin, tile_n=4096)
    out = jax.block_until_ready(out)

    # f32 reference on the same sampled neighborhood
    h_src = node_feat[samp_src]                                  # (N, S, node_dim)
    e_samp = edge_feat[samp_eid]                                 # (N, S, edge_dim)
    ref = reference(node_feat, h_src, e_samp, w_edge, b_edge, w_lin, b_lin)

    assert out.shape == (N, emb_dim)
    # bf16 features / weights / output -> loosened tolerance (f32 accumulation).
    assert jnp.allclose(out.astype(jnp.float32), ref, atol=3e-2, rtol=3e-2), \
        "mismatch vs reference"

    print("KERNEL_OK")
</pallas_src>

<mosaic_0001>
module attributes {stable_mosaic.version = 11 : i64} {
  func.func @sage_kernel(%arg0: i32, %arg1: memref<16x128xbf16, #tpu.memory_space<vmem>>, %arg2: memref<128x128xbf16, #tpu.memory_space<vmem>>, %arg3: memref<64x128xbf16, #tpu.memory_space<vmem>>, %arg4: memref<32x16xbf16, #tpu.memory_space<vmem>>, %arg5: memref<32x128xbf16, #tpu.memory_space<vmem>>, %arg6: memref<32x64xbf16, #tpu.memory_space<vmem>>, %arg7: memref<32x1xf32, #tpu.memory_space<vmem>>, %arg8: memref<32x128xbf16, #tpu.memory_space<vmem>>) attributes {dimension_semantics = [#tpu.dimension_semantics<parallel>], iteration_bounds = array<i64: 2>, scalar_prefetch = 0 : i64, scratch_operands = 0 : i64, tpu.core_type = #tpu.core_type<tc>, window_params = [{transform_indices = @transform_0, window_bounds = array<i64: 16, 128>}, {transform_indices = @transform_1, window_bounds = array<i64: 128, 128>}, {transform_indices = @transform_2, window_bounds = array<i64: 64, 128>}, {pipeline_mode = #tpu.pipeline_mode<synchronous>, transform_indices = @transform_3, window_bounds = array<i64: 32, 16>}, {pipeline_mode = #tpu.pipeline_mode<synchronous>, transform_indices = @transform_4, window_bounds = array<i64: 32, 128>}, {pipeline_mode = #tpu.pipeline_mode<synchronous>, transform_indices = @transform_5, window_bounds = array<i64: 32, 64>}, {pipeline_mode = #tpu.pipeline_mode<synchronous>, transform_indices = @transform_6, window_bounds = array<i64: 32, 1>}, {transform_indices = @transform_7, window_bounds = array<i64: 32, 128>}]} {
    %c0 = arith.constant 0 : index
    %c0_0 = arith.constant 0 : index
    %0 = vector.load %arg4[%c0, %c0_0] : memref<32x16xbf16, #tpu.memory_space<vmem>>, vector<32x16xbf16>
    %c0_1 = arith.constant 0 : index
    %c0_2 = arith.constant 0 : index
    %1 = vector.load %arg1[%c0_1, %c0_2] : memref<16x128xbf16, #tpu.memory_space<vmem>>, vector<16x128xbf16>
    %cst = arith.constant dense<0.000000e+00> : vector<32x128xf32>
    %2 = tpu.matmul %0, %1, %cst {dimension_numbers = #tpu.dot_dimension_numbers<[1], [0], [0], [1], [0, 0, 1, 1], [], []>} : vector<32x16xbf16>, vector<16x128xbf16>, vector<32x128xf32> -> vector<32x128xf32>
    %c0_3 = arith.constant 0 : index
    %c0_4 = arith.constant 0 : index
    %3 = vector.load %arg5[%c0_3, %c0_4] : memref<32x128xbf16, #tpu.memory_space<vmem>>, vector<32x128xbf16>
    %c0_5 = arith.constant 0 : index
    %c0_6 = arith.constant 0 : index
    %4 = vector.load %arg2[%c0_5, %c0_6] : memref<128x128xbf16, #tpu.memory_space<vmem>>, vector<128x128xbf16>
    %cst_7 = arith.constant dense<0.000000e+00> : vector<32x128xf32>
    %5 = tpu.matmul %3, %4, %cst_7 {dimension_numbers = #tpu.dot_dimension_numbers<[1], [0], [0], [1], [0, 0, 1, 1], [], []>} : vector<32x128xbf16>, vector<128x128xbf16>, vector<32x128xf32> -> vector<32x128xf32>
    %6 = arith.addf %2, %5 : vector<32x128xf32>
    %c0_8 = arith.constant 0 : index
    %c0_9 = arith.constant 0 : index
    %7 = vector.load %arg6[%c0_8, %c0_9] : memref<32x64xbf16, #tpu.memory_space<vmem>>, vector<32x64xbf16>
    %c0_10 = arith.constant 0 : index
    %c0_11 = arith.constant 0 : index
    %8 = vector.load %arg3[%c0_10, %c0_11] : memref<64x128xbf16, #tpu.memory_space<vmem>>, vector<64x128xbf16>
    %cst_12 = arith.constant dense<0.000000e+00> : vector<32x128xf32>
    %9 = tpu.matmul %7, %8, %cst_12 {dimension_numbers = #tpu.dot_dimension_numbers<[1], [0], [0], [1], [0, 0, 1, 1], [], []>} : vector<32x64xbf16>, vector<64x128xbf16>, vector<32x128xf32> -> vector<32x128xf32>
    %10 = arith.addf %6, %9 : vector<32x128xf32>
    %c0_13 = arith.constant 0 : index
    %c0_14 = arith.constant 0 : index
    %11 = vector.load %arg7[%c0_13, %c0_14] : memref<32x1xf32, #tpu.memory_space<vmem>>, vector<32x1xf32>
    %12 = vector.broadcast %11 : vector<32x1xf32> to vector<32x128xf32>
    %13 = arith.addf %10, %12 : vector<32x128xf32>
    %cst_15 = arith.constant 0.000000e+00 : f32
    %14 = vector.broadcast %cst_15 : f32 to vector<32x128xf32>
    %15 = arith.maximumf %13, %14 : vector<32x128xf32>
    %16 = arith.truncf %15 : vector<32x128xf32> to vector<32x128xbf16>
    %c0_16 = arith.constant 0 : index
    %c0_17 = arith.constant 0 : index
    %17 = vector.load %arg8[%c0_16, %c0_17] : memref<32x128xbf16, #tpu.memory_space<vmem>>, vector<32x128xbf16>
    tpu.vector_store %arg8[%c0_16, %c0_17], %16 {strides = array<i32>} : memref<32x128xbf16, #tpu.memory_space<vmem>>, vector<32x128xbf16>,
    return
  }
  func.func @transform_0(%arg0: i32) -> (i32, i32) {
    %c0_i32 = arith.constant 0 : i32
    %c0_i32_0 = arith.constant 0 : i32
    return %c0_i32, %arg0 : i32, i32
  }
  func.func @transform_1(%arg0: i32) -> (i32, i32) {
    %c0_i32 = arith.constant 0 : i32
    %c0_i32_0 = arith.constant 0 : i32
    return %c0_i32, %arg0 : i32, i32
  }
  func.func @transform_2(%arg0: i32) -> (i32, i32) {
    %c0_i32 = arith.constant 0 : i32
    %c0_i32_0 = arith.constant 0 : i32
    return %c0_i32, %arg0 : i32, i32
  }
  func.func @transform_3(%arg0: i32) -> (i32, i32) {
    %c0_i32 = arith.constant 0 : i32
    %c0_i32_0 = arith.constant 0 : i32
    %c0_i32_1 = arith.constant 0 : i32
    return %c0_i32, %c0_i32_0 : i32, i32
  }
  func.func @transform_4(%arg0: i32) -> (i32, i32) {
    %c0_i32 = arith.constant 0 : i32
    %c0_i32_0 = arith.constant 0 : i32
    %c0_i32_1 = arith.constant 0 : i32
    return %c0_i32, %c0_i32_0 : i32, i32
  }
  func.func @transform_5(%arg0: i32) -> (i32, i32) {
    %c0_i32 = arith.constant 0 : i32
    %c0_i32_0 = arith.constant 0 : i32
    %c0_i32_1 = arith.constant 0 : i32
    return %c0_i32, %c0_i32_0 : i32, i32
  }
  func.func @transform_6(%arg0: i32) -> (i32, i32) {
    %c0_i32 = arith.constant 0 : i32
    %c0_i32_0 = arith.constant 0 : i32
    %c0_i32_1 = arith.constant 0 : i32
    return %c0_i32, %c0_i32_0 : i32, i32
  }
  func.func @transform_7(%arg0: i32) -> (i32, i32) {
    %c0_i32 = arith.constant 0 : i32
    %c0_i32_0 = arith.constant 0 : i32
    return %c0_i32, %arg0 : i32, i32
  }
}

</mosaic_0001>

<llo_original>
// kernel: tpu_custom_call.1
$region0: #{tpu_custom_call.1}
  #allocation0 [shape = 'u32[]', space=smem, size = 0x4, offset = 0x4, fixed_abs, tag = 'smem constant byte address 0x4 - core index']
  #allocation1 [shape = 'u32[144,128]{1,0:T(1,128)}', space=vmem, size = 0x12000, scoped, tag = 'internal scratch']
  %s0 = inlined_call_operand.hbm [shape: bf16[16,256], index: 0, kind: input, shape index: {}]
  %s1 = inlined_call_operand.hbm [shape: bf16[128,256], index: 1, kind: input, shape index: {}]
  %s2 = inlined_call_operand.vmem [shape: bf16[64,256], index: 2, kind: input, shape index: {}]
  %s3 = inlined_call_operand.vmem [shape: bf16[32,16], index: 3, kind: input, shape index: {}]
  %s4 = inlined_call_operand.hbm [shape: bf16[32,128], index: 4, kind: input, shape index: {}]
  %s5 = inlined_call_operand.hbm [shape: bf16[32,64], index: 5, kind: input, shape index: {}]
  %s6 = inlined_call_operand.vmem [shape: f32[32,1], index: 6, kind: input, shape index: {}]
  %s7 = inlined_call_operand.hbm [shape: bf16[32,256], index: 7, kind: output, shape index: {}]
  %s8 = sld [smem:[#allocation0]]
  $region118: #{tpu_custom_call.1} parent=0
    _
  %s10 = ssub.s32 1, %s8
  %s11 = scalar_select 0, %s10, %s8
  $region1: #{tpu_custom_call.1} parent=0
    #allocation2 [shape = 'u8[8192]{0}', space=vmem, size = 0x2000, scoped, tag = 'input window, operand 0']
    #allocation3 [shape = 's32[2]{0}', space=sflag, size = 0x8, scoped, tag = 'scoped memory for tpu_custom_call.1']
    #allocation4 [shape = 's32[2]{0}', space=sflag, size = 0x8, scoped, tag = 'scoped memory for tpu_custom_call.1']
    #allocation5 [shape = 'u8[65536]{0}', space=vmem, size = 0x10000, scoped, tag = 'input window, operand 1']
    #allocation6 [shape = 's32[2]{0}', space=sflag, size = 0x8, scoped, tag = 'scoped memory for tpu_custom_call.1']
    #allocation7 [shape = 'u8[32768]{0}', space=vmem, size = 0x8000, scoped, tag = 'input window, operand 2']
    #allocation8 [shape = 'u8[8192]{0}', space=vmem, size = 0x2000, scoped, tag = 'input window, operand 4, single buffered']
    #allocation9 [shape = 'u8[8192]{0}', space=vmem, size = 0x2000, scoped, tag = 'input window, operand 5, single buffered']
    #allocation10 [shape = 's32[1]{0}', space=sflag, size = 0x4, scoped, tag = 'scoped memory for tpu_custom_call.1']
    #allocation11 [shape = 'u8[16384]{0}', space=vmem, size = 0x4000, scoped, tag = 'output window, operand 0']
    %12 = vsyncpa [#allocation3], 0
    %s13 = scalar_lea.sflag [#allocation3], 1
    %14 = vsyncpa %s13, 0
    %15 = vsyncpa [#allocation6], 0
    %s16 = scalar_lea.sflag [#allocation6], 1
    %17 = vsyncpa %s16, 0
    %18 = vsyncpa [#allocation10], 0
    %19 = vsyncpa [#allocation4], 0
    %s20 = scalar_lea.sflag [#allocation4], 1
    %21 = vsyncpa %s20, 0
    loop: start=0, step=1, limit=4
    $region2: #{tpu_custom_call.1} parent=1 // loop_pre_header
      _
    $region3: #{tpu_custom_call.1} parent=1 // loop_header
      %s23 = sphi 0, %s27
      %p24 = scmp.ge.s32.totalorder %s23, 4
      %s33 = sphi 0, %s35
      %s36 = sphi 0, %s33
      %s37 = sphi 0, %s36
      %s53 = sphi 0, %s37
      %s59 = sphi 0, %s61
      %s62 = sphi 0, %s59
      %s63 = sphi 0, %s62
      %s79 = sphi 0, %s63
      %s85 = sphi 0, %s87
      %s88 = sphi 0, %s85
      %s89 = sphi 0, %s88
      %s105 = sphi 0, %s89
      %s109 = sphi 0, %s109
      %s111 = sphi 0, %s109
      %s112 = sphi 0, %s111
      %s126 = sphi 0, %s112
      %s130 = sphi 0, %s130
      %s132 = sphi 0, %s130
      %s133 = sphi 0, %s132
      %s147 = sphi 0, %s133
      %s151 = sphi 0, %s151
      %s153 = sphi 0, %s151
      %s154 = sphi 0, %s153
      %s168 = sphi 0, %s154
      %s172 = sphi 0, %s172
      %s174 = sphi 0, %s172
      %s175 = sphi 0, %s174
      %s189 = sphi 0, %s175
      %s195 = sphi 0, %s197
      %s198 = sphi 0, %s195
      %s199 = sphi 0, %s198
      %s215 = sphi 0, %s199
    $region4: #{tpu_custom_call.1} parent=1 // loop_header_branch
      %26 = sbr.rel (%p24) target = $region8
    $region5: #{tpu_custom_call.1} parent=1 // loop_body
      %s28 = ssub.s32 %s23, 1
      %s29 = ssub.s32 %s23, 2
      %s30 = sadd.s32 %s23, 1
      %s31 = ssub.s32 %s23, %s30
      %p32 = scmp.eq.s32.totalorder %s31, 0
      %s34 = sadd.s32 %s33, 1
      %s35 = scalar_select %p32, %s33, %s34
      %p38 = pneg %p32
      %p39 = scmp.eq.s32.totalorder %s23, 1
      %p40 = por %p38, %p39
      %p41 = scmp.ne.s32.totalorder %s33, %s36
      %p42 = scmp.eq.s32.totalorder %s23, 0
      %p43 = por %p41, %p42
      %p44 = scmp.ne.s32.totalorder %s33, %s36
      %p45 = scmp.eq.s32.totalorder %s28, 1
      %p46 = por %p44, %p45
      %p47 = scmp.ne.s32.totalorder %s36, %s37
      %p48 = scmp.eq.s32.totalorder %s28, 0
      %p49 = por %p47, %p48
      %p50 = scmp.ne.s32.totalorder %s36, %s37
      %p51 = scmp.eq.s32.totalorder %s29, 1
      %p52 = por %p50, %p51
      %p54 = scmp.ne.s32.totalorder %s37, %s53
      %p55 = scmp.eq.s32.totalorder %s29, 0
      %p56 = por %p54, %p55
      %s57 = ssub.s32 %s23, %s30
      %p58 = scmp.eq.s32.totalorder %s57, 0
      %s60 = sadd.s32 %s59, 1
      %s61 = scalar_select %p58, %s59, %s60
      %p64 = pneg %p58
      %p65 = scmp.eq.s32.totalorder %s23, 1
      %p66 = por %p64, %p65
      %p67 = scmp.ne.s32.totalorder %s59, %s62
      %p68 = scmp.eq.s32.totalorder %s23, 0
      %p69 = por %p67, %p68
      %p70 = scmp.ne.s32.totalorder %s59, %s62
      %p71 = scmp.eq.s32.totalorder %s28, 1
      %p72 = por %p70, %p71
      %p73 = scmp.ne.s32.totalorder %s62, %s63
      %p74 = scmp.eq.s32.totalorder %s28, 0
      %p75 = por %p73, %p74
      %p76 = scmp.ne.s32.totalorder %s62, %s63
      %p77 = scmp.eq.s32.totalorder %s29, 1
      %p78 = por %p76, %p77
      %p80 = scmp.ne.s32.totalorder %s63, %s79
      %p81 = scmp.eq.s32.totalorder %s29, 0
      %p82 = por %p80, %p81
      %s83 = ssub.s32 %s23, %s30
      %p84 = scmp.eq.s32.totalorder %s83, 0
      %s86 = sadd.s32 %s85, 1
      %s87 = scalar_select %p84, %s85, %s86
      %p90 = pneg %p84
      %p91 = scmp.eq.s32.totalorder %s23, 1
      %p92 = por %p90, %p91
      %p93 = scmp.ne.s32.totalorder %s85, %s88
      %p94 = scmp.eq.s32.totalorder %s23, 0
      %p95 = por %p93, %p94
      %p96 = scmp.ne.s32.totalorder %s85, %s88
      %p97 = scmp.eq.s32.totalorder %s28, 1
      %p98 = por %p96, %p97
      %p99 = scmp.ne.s32.totalorder %s88, %s89
      %p100 = scmp.eq.s32.totalorder %s28, 0
      %p101 = por %p99, %p100
      %p102 = scmp.ne.s32.totalorder %s88, %s89
      %p103 = scmp.eq.s32.totalorder %s29, 1
      %p104 = por %p102, %p103
      %p106 = scmp.ne.s32.totalorder %s89, %s105
      %p107 = scmp.eq.s32.totalorder %s29, 0
      %p108 = por %p106, %p107
      %s110 = sadd.s32 %s109, 1
      %p113 = scmp.eq.s32.totalorder %s23, 1
      %p114 = scmp.ne.s32.totalorder %s109, %s111
      %p115 = scmp.eq.s32.totalorder %s23, 0
      %p116 = por %p114, %p115
      %p117 = scmp.ne.s32.totalorder %s109, %s111
      %p118 = scmp.eq.s32.totalorder %s28, 1
      %p119 = por %p117, %p118
      %p120 = scmp.ne.s32.totalorder %s111, %s112
      %p121 = scmp.eq.s32.totalorder %s28, 0
      %p122 = por %p120, %p121
      %p123 = scmp.ne.s32.totalorder %s111, %s112
      %p124 = scmp.eq.s32.totalorder %s29, 1
      %p125 = por %p123, %p124
      %p127 = scmp.ne.s32.totalorder %s112, %s126
      %p128 = scmp.eq.s32.totalorder %s29, 0
      %p129 = por %p127, %p128
      %s131 = sadd.s32 %s130, 1
      %p134 = scmp.eq.s32.totalorder %s23, 1
      %p135 = scmp.ne.s32.totalorder %s130, %s132
      %p136 = scmp.eq.s32.totalorder %s23, 0
      %p137 = por %p135, %p136
      %p138 = scmp.ne.s32.totalorder %s130, %s132
      %p139 = scmp.eq.s32.totalorder %s28, 1
      %p140 = por %p138, %p139
      %p141 = scmp.ne.s32.totalorder %s132, %s133
      %p142 = scmp.eq.s32.totalorder %s28, 0
      %p143 = por %p141, %p142
      %p144 = scmp.ne.s32.totalorder %s132, %s133
      %p145 = scmp.eq.s32.totalorder %s29, 1
      %p146 = por %p144, %p145
      %p148 = scmp.ne.s32.totalorder %s133, %s147
      %p149 = scmp.eq.s32.totalorder %s29, 0
      %p150 = por %p148, %p149
      %s152 = sadd.s32 %s151, 1
      %p155 = scmp.eq.s32.totalorder %s23, 1
      %p156 = scmp.ne.s32.totalorder %s151, %s153
      %p157 = scmp.eq.s32.totalorder %s23, 0
      %p158 = por %p156, %p157
      %p159 = scmp.ne.s32.totalorder %s151, %s153
      %p160 = scmp.eq.s32.totalorder %s28, 1
      %p161 = por %p159, %p160
      %p162 = scmp.ne.s32.totalorder %s153, %s154
      %p163 = scmp.eq.s32.totalorder %s28, 0
      %p164 = por %p162, %p163
      %p165 = scmp.ne.s32.totalorder %s153, %s154
      %p166 = scmp.eq.s32.totalorder %s29, 1
      %p167 = por %p165, %p166
      %p169 = scmp.ne.s32.totalorder %s154, %s168
      %p170 = scmp.eq.s32.totalorder %s29, 0
      %p171 = por %p169, %p170
      %s173 = sadd.s32 %s172, 1
      %p176 = scmp.eq.s32.totalorder %s23, 1
      %p177 = scmp.ne.s32.totalorder %s172, %s174
      %p178 = scmp.eq.s32.totalorder %s23, 0
      %p179 = por %p177, %p178
      %p180 = scmp.ne.s32.totalorder %s172, %s174
      %p181 = scmp.eq.s32.totalorder %s28, 1
      %p182 = por %p180, %p181
      %p183 = scmp.ne.s32.totalorder %s174, %s175
      %p184 = scmp.eq.s32.totalorder %s28, 0
      %p185 = por %p183, %p184
      %p186 = scmp.ne.s32.totalorder %s174, %s175
      %p187 = scmp.eq.s32.totalorder %s29, 1
      %p188 = por %p186, %p187
      %p190 = scmp.ne.s32.totalorder %s175, %s189
      %p191 = scmp.eq.s32.totalorder %s29, 0
      %p192 = por %p190, %p191
      %s193 = ssub.s32 %s23, %s30
      %p194 = scmp.eq.s32.totalorder %s193, 0
      %s196 = sadd.s32 %s195, 1
      %s197 = scalar_select %p194, %s195, %s196
      %p200 = pneg %p194
      %p201 = scmp.eq.s32.totalorder %s23, 1
      %p202 = por %p200, %p201
      %p203 = scmp.ne.s32.totalorder %s195, %s198
      %p204 = scmp.eq.s32.totalorder %s23, 0
      %p205 = por %p203, %p204
      %p206 = scmp.ne.s32.totalorder %s195, %s198
      %p207 = scmp.eq.s32.totalorder %s28, 1
      %p208 = por %p206, %p207
      %p209 = scmp.ne.s32.totalorder %s198, %s199
      %p210 = scmp.eq.s32.totalorder %s28, 0
      %p211 = por %p209, %p210
      %p212 = scmp.ne.s32.totalorder %s198, %s199
      %p213 = scmp.eq.s32.totalorder %s29, 1
      %p214 = por %p212, %p213
      %p216 = scmp.ne.s32.totalorder %s199, %s215
      %p217 = scmp.eq.s32.totalorder %s29, 0
      %p218 = por %p216, %p217
      %p219 = scmp.le.s32.totalorder 1, %s23
      %p220 = scmp.lt.s32.totalorder %s23, 3
      %p221 = pnand %p219, %p220
      %p222 = pneg %p221
      // Predicated region
      $region9: #{tpu_custom_call.1} parent=5 // pred_check
        _
      $region10: #{tpu_custom_call.1} parent=5 // pred_check_branch
        %224 = sbr.rel (%p221) target = $region12
      $region11: #{tpu_custom_call.1} parent=5 // pred_region
        %s225 = ssub.s32 %s23, 1
        // Predicated region
        $region13: #{tpu_custom_call.1} parent=11 // pred_check
          %p226 = pneg %p122
        $region14: #{tpu_custom_call.1} parent=11 // pred_check_branch
          %228 = sbr.rel (%p226) target = $region16
        $region15: #{tpu_custom_call.1} parent=11 // pred_region
          _
        $region16: #{tpu_custom_call.1} parent=11 // pred_fallthru
          _
        // Predicated region
        $region17: #{tpu_custom_call.1} parent=11 // pred_check
          %p229 = pneg %p143
        $region18: #{tpu_custom_call.1} parent=11 // pred_check_branch
          %231 = sbr.rel (%p229) target = $region20
        $region19: #{tpu_custom_call.1} parent=11 // pred_region
          %s233 = ssub.s32 256, 256
          %234 = vsyncadd [#allocation6], %s233
          %s235 = sshll.u32 [#allocation8], 4
          %s236 = int_to_ptr.vmem [resolvable:$true] %s235
          %241 = dma.hbm_to_vmem [thread:$0]  %s4, 256, %s236, [#allocation6], 64, 64, 4
        $region20: #{tpu_custom_call.1} parent=11 // pred_fallthru
          _
        // Predicated region
        $region21: #{tpu_custom_call.1} parent=11 // pred_check
          %p242 = pneg %p164
        $region22: #{tpu_custom_call.1} parent=11 // pred_check_branch
          %244 = sbr.rel (%p242) target = $region24
        $region23: #{tpu_custom_call.1} parent=11 // pred_region
          %s246 = ssub.s32 256, 256
          %247 = vsyncadd [#allocation10], %s246
          %s248 = sshll.u32 [#allocation9], 4
          %s249 = int_to_ptr.vmem [resolvable:$true] %s248
          %254 = dma.hbm_to_vmem [thread:$0]  %s5, 256, %s249, [#allocation10], 64, 64, 4
        $region24: #{tpu_custom_call.1} parent=11 // pred_fallthru
          _
        // Predicated region
        $region25: #{tpu_custom_call.1} parent=11 // pred_check
          %p255 = pneg %p185
        $region26: #{tpu_custom_call.1} parent=11 // pred_check_branch
          %257 = sbr.rel (%p255) target = $region28
        $region27: #{tpu_custom_call.1} parent=11 // pred_region
          _
        $region28: #{tpu_custom_call.1} parent=11 // pred_fallthru
          _
      $region12: #{tpu_custom_call.1} parent=5 // pred_fallthru
        _
      %p258 = scmp.lt.s32.totalorder %s23, 2
      // Predicated region
      $region29: #{tpu_custom_call.1} parent=5 // pred_check
        %p259 = pneg %p258
      $region30: #{tpu_custom_call.1} parent=5 // pred_check_branch
        %261 = sbr.rel (%p259) target = $region32
      $region31: #{tpu_custom_call.1} parent=5 // pred_region
        // Predicated region
        $region33: #{tpu_custom_call.1} parent=31 // pred_check
          %p262 = pneg %p43
        $region34: #{tpu_custom_call.1} parent=31 // pred_check_branch
          %264 = sbr.rel (%p262) target = $region36
        $region35: #{tpu_custom_call.1} parent=31 // pred_region
          %s265 = sand.u32 %s33, 1
          %s266 = scalar_lea.sflag [#allocation3], %s265
          %s267 = sand.u32 %s33, 1
          %s268 = smul.addr %s267, 8
          %s269 = scalar_lea.vmem [#allocation2], %s268
          %s271 = ssub.s32 128, 128
          %272 = vsyncadd %s266, %s271
          %s273 = smul.addr %s23, 64
          %s274 = scalar_lea.hbm %s0, %s273
          %s275 = sshll.u32 %s269, 4
          %s276 = int_to_ptr.vmem [resolvable:$true] %s275
          %281 = dma.hbm_to_vmem [thread:$0]  %s274, 128, %s276, %s266, 128, 64, 4
        $region36: #{tpu_custom_call.1} parent=31 // pred_fallthru
          _
        // Predicated region
        $region37: #{tpu_custom_call.1} parent=31 // pred_check
          %p282 = pneg %p69
        $region38: #{tpu_custom_call.1} parent=31 // pred_check_branch
          %284 = sbr.rel (%p282) target = $region40
        $region39: #{tpu_custom_call.1} parent=31 // pred_region
          %s285 = sand.u32 %s23, 1
          %s286 = scalar_lea.sflag [#allocation6], %s285
          %s287 = sand.u32 %s59, 1
          %s288 = smul.addr %s287, 64
          %s289 = scalar_lea.vmem [#allocation5], %s288
          %s291 = ssub.s32 1024, 1024
          %292 = vsyncadd %s286, %s291
          %s293 = smul.addr %s23, 64
          %s294 = scalar_lea.hbm %s1, %s293
          %s295 = sshll.u32 %s289, 4
          %s296 = int_to_ptr.vmem [resolvable:$true] %s295
          %301 = dma.hbm_to_vmem [thread:$0]  %s294, 1024, %s296, %s286, 128, 64, 4
        $region40: #{tpu_custom_call.1} parent=31 // pred_fallthru
          _
        // Predicated region
        $region41: #{tpu_custom_call.1} parent=31 // pred_check
          %p302 = pneg %p95
        $region42: #{tpu_custom_call.1} parent=31 // pred_check_branch
          %304 = sbr.rel (%p302) target = $region44
        $region43: #{tpu_custom_call.1} parent=31 // pred_region
          %s305 = sand.u32 %s85, 1
          %s306 = sand.u32 %s85, 1
          %s307 = smul.addr %s306, 32
          %s308 = scalar_lea.vmem [#allocation7], %s307
          %s309 = smul.addr %s23, 4
          %s310 = scalar_lea.vmem %s2, %s309
          // Predicated region
          $region45: #{tpu_custom_call.1} parent=43 // pred_check
            _
          $region46: #{tpu_custom_call.1} parent=43 // pred_check_branch
            %312 = sbr.rel (0) target = $region48
          $region47: #{tpu_custom_call.1} parent=43 // pred_region
            // Predicated region
            $region49: #{tpu_custom_call.1} parent=47 // pred_check
              _
            $region50: #{tpu_custom_call.1} parent=47 // pred_check_branch
              %314 = sbr.rel target = $region52
            $region51: #{tpu_custom_call.1} parent=47 // pred_region
              // Predicated region
              $region64: #{tpu_custom_call.1} parent=51 // pred_check
                _
              $region65: #{tpu_custom_call.1} parent=51 // pred_check_branch
                %343 = sbr.rel (0) target = $region67
              $region66: #{tpu_custom_call.1} parent=51 // pred_region
                loop: start=0, step=1, limit=1
                $region68: #{tpu_custom_call.1} parent=66 // loop_pre_header
                  _
                $region69: #{tpu_custom_call.1} parent=66 // loop_header
                  %s345 = sphi 0, %s349
                  %p346 = scmp.ge.s32.totalorder %s345, 1
                  %s350 = sphi %s310, %s310
                  %s351 = sphi %s308, %s308
                $region70: #{tpu_custom_call.1} parent=66 // loop_header_branch
                  %348 = sbr.rel (%p346) target = $region74
                $region71: #{tpu_custom_call.1} parent=66 // loop_body
                  _
                $region72: #{tpu_custom_call.1} parent=66 // loop_footer
                  %s349 = sadd.s32 1, %s345
                $region73: #{tpu_custom_call.1} parent=66 // loop_footer_branch
                  %344 = sbr.rel target = $region69
                $region74: #{tpu_custom_call.1} parent=66 // loop_exit
                  _
                loop: start=0, step=1, limit=1
                $region75: #{tpu_custom_call.1} parent=66 // loop_pre_header
                  _
                $region76: #{tpu_custom_call.1} parent=66 // loop_header
                  %s354 = sphi 0, %s358
                  %p355 = scmp.ge.s32.totalorder %s354, 1
                  %s359 = sphi %s310, %s310
                  %s360 = sphi %s308, %s308
                $region77: #{tpu_custom_call.1} parent=66 // loop_header_branch
                  %357 = sbr.rel (%p355) target = $region81
                $region78: #{tpu_custom_call.1} parent=66 // loop_body
                  %v361 = vld [vmem:[%s359] sm:$0xf]
                  %362 = vst [vmem:[%s360] sm:$0xf] %v361
                  %v363 = vld [vmem:[%s359 + $0x8] sm:$0xf]
                  %364 = vst [vmem:[%s360 + $0x4] sm:$0xf] %v363
                  %v365 = vld [vmem:[%s359 + $0x10] sm:$0xf]
                  %366 = vst [vmem:[%s360 + $0x8] sm:$0xf] %v365
                  %v367 = vld [vmem:[%s359 + $0x18] sm:$0xf]
                  %368 = vst [vmem:[%s360 + $0xc] sm:$0xf] %v367
                  %v369 = vld [vmem:[%s359 + $0x20] sm:$0xf]
                  %370 = vst [vmem:[%s360 + $0x10] sm:$0xf] %v369
                  %v371 = vld [vmem:[%s359 + $0x28] sm:$0xf]
                  %372 = vst [vmem:[%s360 + $0x14] sm:$0xf] %v371
                  %v373 = vld [vmem:[%s359 + $0x30] sm:$0xf]
                  %374 = vst [vmem:[%s360 + $0x18] sm:$0xf] %v373
                  %v375 = vld [vmem:[%s359 + $0x38] sm:$0xf]
                  %376 = vst [vmem:[%s360 + $0x1c] sm:$0xf] %v375
                $region79: #{tpu_custom_call.1} parent=66 // loop_footer
                  %s358 = sadd.s32 1, %s354
                $region80: #{tpu_custom_call.1} parent=66 // loop_footer_branch
                  %353 = sbr.rel target = $region76
                $region81: #{tpu_custom_call.1} parent=66 // loop_exit
                  _
              $region67: #{tpu_custom_call.1} parent=51 // pred_fallthru
                _
            $region52: #{tpu_custom_call.1} parent=47 // pred_fallthru
              _
            // Predicated region
            $region53: #{tpu_custom_call.1} parent=47 // pred_check
              _
            $region54: #{tpu_custom_call.1} parent=47 // pred_check_branch
              %316 = sbr.rel (0) target = $region56
            $region55: #{tpu_custom_call.1} parent=47 // pred_region
              loop: start=0, step=1, limit=1
              $region57: #{tpu_custom_call.1} parent=55 // loop_pre_header
                _
              $region58: #{tpu_custom_call.1} parent=55 // loop_header
                %s319 = sphi 0, %s323
                %p320 = scmp.ge.s32.totalorder %s319, 1
                %s324 = sphi %s310, %s310
                %s325 = sphi %s308, %s308
              $region59: #{tpu_custom_call.1} parent=55 // loop_header_branch
                %322 = sbr.rel (%p320) target = $region63
              $region60: #{tpu_custom_call.1} parent=55 // loop_body
                %v326 = vld [vmem:[%s324] sm:$0xf]
                %327 = vst [vmem:[%s325] sm:$0xf] %v326
                %v328 = vld [vmem:[%s324 + $0x8] sm:$0xf]
                %329 = vst [vmem:[%s325 + $0x4] sm:$0xf] %v328
                %v330 = vld [vmem:[%s324 + $0x10] sm:$0xf]
                %331 = vst [vmem:[%s325 + $0x8] sm:$0xf] %v330
                %v332 = vld [vmem:[%s324 + $0x18] sm:$0xf]
                %333 = vst [vmem:[%s325 + $0xc] sm:$0xf] %v332
                %v334 = vld [vmem:[%s324 + $0x20] sm:$0xf]
                %335 = vst [vmem:[%s325 + $0x10] sm:$0xf] %v334
                %v336 = vld [vmem:[%s324 + $0x28] sm:$0xf]
                %337 = vst [vmem:[%s325 + $0x14] sm:$0xf] %v336
                %v338 = vld [vmem:[%s324 + $0x30] sm:$0xf]
                %339 = vst [vmem:[%s325 + $0x18] sm:$0xf] %v338
                %v340 = vld [vmem:[%s324 + $0x38] sm:$0xf]
                %341 = vst [vmem:[%s325 + $0x1c] sm:$0xf] %v340
              $region61: #{tpu_custom_call.1} parent=55 // loop_footer
                %s323 = sadd.s32 1, %s319
              $region62: #{tpu_custom_call.1} parent=55 // loop_footer_branch
                %318 = sbr.rel target = $region58
              $region63: #{tpu_custom_call.1} parent=55 // loop_exit
                _
            $region56: #{tpu_custom_call.1} parent=47 // pred_fallthru
              _
          $region48: #{tpu_custom_call.1} parent=43 // pred_fallthru
            _
          %377 = vnop
        $region44: #{tpu_custom_call.1} parent=31 // pred_fallthru
          _
      $region32: #{tpu_custom_call.1} parent=5 // pred_fallthru
        _
      %p378 = scmp.le.s32.totalorder 1, %s23
      %p379 = scmp.lt.s32.totalorder %s23, 3
      %p380 = pnand %p378, %p379
      %p381 = pneg %p380
      // Predicated region
      $region82: #{tpu_custom_call.1} parent=5 // pred_check
        _
      $region83: #{tpu_custom_call.1} parent=5 // pred_check_branch
        %383 = sbr.rel (%p380) target = $region85
      $region84: #{tpu_custom_call.1} parent=5 // pred_region
        %s384 = ssub.s32 %s23, 1
        %s385 = sand.u32 %s36, 1
        %s386 = scalar_lea.sflag [#allocation3], %s385
        %s387 = sand.u32 %s36, 1
        %s388 = smul.addr %s387, 8
        %s389 = scalar_lea.vmem [#allocation2], %s388
        // Predicated region
        $region86: #{tpu_custom_call.1} parent=84 // pred_check
          %p390 = pneg %p49
        $region87: #{tpu_custom_call.1} parent=84 // pred_check_branch
          %392 = sbr.rel (%p390) target = $region89
        $region88: #{tpu_custom_call.1} parent=84 // pred_region
          %393 = dma.done %s386, 128
        $region89: #{tpu_custom_call.1} parent=84 // pred_fallthru
          _
        %s394 = sand.u32 %s28, 1
        %s395 = scalar_lea.sflag [#allocation6], %s394
        %s396 = sand.u32 %s62, 1
        %s397 = smul.addr %s396, 64
        %s398 = scalar_lea.vmem [#allocation5], %s397
        // Predicated region
        $region90: #{tpu_custom_call.1} parent=84 // pred_check
          %p399 = pneg %p75
        $region91: #{tpu_custom_call.1} parent=84 // pred_check_branch
          %401 = sbr.rel (%p399) target = $region93
        $region92: #{tpu_custom_call.1} parent=84 // pred_region
          %402 = dma.done %s395, 1024
        $region93: #{tpu_custom_call.1} parent=84 // pred_fallthru
          _
        %s403 = sand.u32 %s88, 1
        %s404 = sand.u32 %s88, 1
        %s405 = smul.addr %s404, 32
        %s406 = scalar_lea.vmem [#allocation7], %s405
        // Predicated region
        $region94: #{tpu_custom_call.1} parent=84 // pred_check
          %p407 = pneg %p101
        $region95: #{tpu_custom_call.1} parent=84 // pred_check_branch
          %409 = sbr.rel (%p407) target = $region97
        $region96: #{tpu_custom_call.1} parent=84 // pred_region
          _
        $region97: #{tpu_custom_call.1} parent=84 // pred_fallthru
          _
        // Predicated region
        $region98: #{tpu_custom_call.1} parent=84 // pred_check
          %p410 = pneg %p143
        $region99: #{tpu_custom_call.1} parent=84 // pred_check_branch
          %412 = sbr.rel (%p410) target = $region101
        $region100: #{tpu_custom_call.1} parent=84 // pred_region
          %413 = dma.done [#allocation6], 256
        $region101: #{tpu_custom_call.1} parent=84 // pred_fallthru
          _
        // Predicated region
        $region102: #{tpu_custom_call.1} parent=84 // pred_check
          %p414 = pneg %p164
        $region103: #{tpu_custom_call.1} parent=84 // pred_check_branch
          %416 = sbr.rel (%p414) target = $region105
        $region104: #{tpu_custom_call.1} parent=84 // pred_region
          %417 = dma.done [#allocation10], 256
        $region105: #{tpu_custom_call.1} parent=84 // pred_fallthru
          _
        %s418 = sand.u32 %s36, 1
        %s419 = scalar_lea.sflag [#allocation3], %s418
        %s420 = sand.u32 %s36, 1
        %s421 = smul.addr %s420, 8
        %s422 = scalar_lea.vmem [#allocation2], %s421
        %p423 = pneg %p49
        %p424 = pneg %p46
        %s425 = sand.u32 %s28, 1
        %s426 = scalar_lea.sflag [#allocation6], %s425
        %s427 = sand.u32 %s62, 1
        %s428 = smul.addr %s427, 64
        %s429 = scalar_lea.vmem [#allocation5], %s428
        %p430 = pneg %p75
        %p431 = pneg %p72
        %s432 = sand.u32 %s88, 1
        %s433 = sand.u32 %s88, 1
        %s434 = smul.addr %s433, 32
        %s435 = scalar_lea.vmem [#allocation7], %s434
        %p436 = pneg %p101
        %p437 = pneg %p98
        %p438 = pneg %p122
        %p439 = pneg %p119
        %p440 = pneg %p143
        %p441 = pneg %p140
        %p442 = pneg %p164
        %p443 = pneg %p161
        %p444 = pneg %p185
        %p445 = pneg %p182
        %p446 = pneg %p211
        %p447 = pneg %p208
        %s448 = sand.u32 %s198, 1
        %s449 = scalar_lea.sflag [#allocation4], %s448
        %s450 = sand.u32 %s198, 1
        %s451 = smul.addr %s450, 16
        %s452 = scalar_lea.vmem [#allocation11], %s451
        %v454 = vld [vmem:[%s3] sm:$0xf]
        %v455 = vld [vmem:[%s3 + $0x4] sm:$0xf]
        %v456 = vld [vmem:[%s3 + $0x8] sm:$0xf]
        %v457 = vld [vmem:[%s3 + $0xc] sm:$0xf]
        %v458 = vld [vmem:[%s389] sm:$0xf]
        %v459 = vld [vmem:[%s389 + $0x4] sm:$0xf]
        %v460 = vld [vmem:[#allocation8] sm:$0xf]
        %v461 = vld [vmem:[#allocation8 + $0x4] sm:$0xf]
        %v462 = vld [vmem:[#allocation8 + $0x8] sm:$0xf]
        %v463 = vld [vmem:[#allocation8 + $0xc] sm:$0xf]
        %v464 = vld [vmem:[%s398] sm:$0xf]
        %v465 = vld [vmem:[%s398 + $0x4] sm:$0xf]
        %v466 = vld [vmem:[%s398 + $0x8] sm:$0xf]
        %v467 = vld [vmem:[%s398 + $0xc] sm:$0xf]
        %v468 = vld [vmem:[%s398 + $0x10] sm:$0xf]
        %v469 = vld [vmem:[%s398 + $0x14] sm:$0xf]
        %v470 = vld [vmem:[%s398 + $0x18] sm:$0xf]
        %v471 = vld [vmem:[%s398 + $0x1c] sm:$0xf]
        %v472 = vld [vmem:[%s398 + $0x20] sm:$0xf]
        %v473 = vld [vmem:[%s398 + $0x24] sm:$0xf]
        %v474 = vld [vmem:[%s398 + $0x28] sm:$0xf]
        %v475 = vld [vmem:[%s398 + $0x2c] sm:$0xf]
        %v476 = vld [vmem:[%s398 + $0x30] sm:$0xf]
        %v477 = vld [vmem:[%s398 + $0x34] sm:$0xf]
        %v478 = vld [vmem:[%s398 + $0x38] sm:$0xf]
        %v479 = vld [vmem:[%s398 + $0x3c] sm:$0xf]
        %v484 = vunpack.c.l.b16 %v460
        %v485 = vunpack.c.l.b16 %v461
        %v486 = vunpack.c.l.b16 %v462
        %v487 = vunpack.c.l.b16 %v463
        %v488 = vpack.c.b16 %v485, %v484
        %v489 = vpack.c.b16 %v487, %v486
        %v508 = vunpack.c.l.b16 %v464
        %v509 = vunpack.c.l.b16 %v465
        %v510 = vunpack.c.l.b16 %v466
        %v511 = vunpack.c.l.b16 %v467
        %v512 = vunpack.c.l.b16 %v468
        %v513 = vunpack.c.l.b16 %v469
        %v514 = vunpack.c.l.b16 %v470
        %v515 = vunpack.c.l.b16 %v471
        %v516 = vunpack.c.l.b16 %v472
        %v517 = vunpack.c.l.b16 %v473
        %v518 = vunpack.c.l.b16 %v474
        %v519 = vunpack.c.l.b16 %v475
        %v520 = vunpack.c.l.b16 %v476
        %v521 = vunpack.c.l.b16 %v477
        %v522 = vunpack.c.l.b16 %v478
        %v523 = vunpack.c.l.b16 %v479
        %v524 = vpack.c.b16 %v509, %v508
        %v525 = vpack.c.b16 %v511, %v510
        %v526 = vpack.c.b16 %v513, %v512
        %v527 = vpack.c.b16 %v515, %v514
        %v528 = vpack.c.b16 %v517, %v516
        %v529 = vpack.c.b16 %v519, %v518
        %v530 = vpack.c.b16 %v521, %v520
        %v531 = vpack.c.b16 %v523, %v522
        %540 = vmatprep.subr.bf16.mxu0 0
        %541 = vmatpush1.bf16.msra.mxu0 %v524
        %542 = vmatprep.subr.bf16.mxu0 0
        %543 = vmatpush1.bf16.msra.mxu0 %v525
        %544 = vmatprep.subr.bf16.mxu0 0
        %545 = vmatpush1.bf16.msra.mxu0 %v526
        %546 = vmatprep.subr.bf16.mxu0 0
        %547 = vmatpush1.bf16.msra.mxu0 %v527
        %548 = vmatprep.subr.bf16.mxu0 0
        %549 = vmatpush1.bf16.msra.mxu0 %v528
        %550 = vmatprep.subr.bf16.mxu0 0
        %551 = vmatpush1.bf16.msra.mxu0 %v529
        %552 = vmatprep.subr.bf16.mxu0 0
        %553 = vmatpush1.bf16.msra.mxu0 %v530
        %554 = vmatprep.subr.bf16.mxu0 0
        %555 = vmatpush1.bf16.msra.mxu0 %v531
        %556 = vmatprep.subr.bf16.mxu0 0
        %557 = vmatpush1.bf16.msra.mxu0 0
        %558 = vmatprep.subr.bf16.mxu0 0
        %559 = vmatpush1.bf16.msra.mxu0 0
        %560 = vmatprep.subr.bf16.mxu0 0
        %561 = vmatpush1.bf16.msra.mxu0 0
        %562 = vmatprep.subr.bf16.mxu0 0
        %563 = vmatpush1.bf16.msra.mxu0 0
        %564 = vmatprep.subr.bf16.mxu0 0
        %565 = vmatpush1.bf16.msra.mxu0 0
        %566 = vmatprep.subr.bf16.mxu0 0
        %567 = vmatpush1.bf16.msra.mxu0 0
        %568 = vmatprep.subr.bf16.mxu0 0
        %569 = vmatpush1.bf16.msra.mxu0 0
        %570 = vmatprep.subr.bf16.mxu0 0
        %571 = vmatpush1.bf16.msra.mxu0 0
        %572 = vmatprep.mubr.bf16.mxu0 0
        %573 = vmatmul.mubr.bf16.gmra.mrb[0].mxu0 %v488
        %v574 = vpop.f32.mrb[0].mxu0
        %v575 = vadd.f32 0.0, %v574
        %v576 = vpop.f32.mrb[0].mxu0
        %v577 = vpop.f32.mrb[0].mxu0
        %v578 = vadd.f32 0.0, %v577
        %v579 = vpop.f32.mrb[0].mxu0
        %580 = vmatprep.mubr.bf16.mxu0 0
        %581 = vmatmul.mubr.bf16.gmra.mrb[0].mxu0 %v489
        %v582 = vpop.f32.mrb[0].mxu0
        %v583 = vadd.f32 0.0, %v582
        %v584 = vpop.f32.mrb[0].mxu0
        %v585 = vpop.f32.mrb[0].mxu0
        %v586 = vadd.f32 0.0, %v585
        %v587 = vpop.f32.mrb[0].mxu0
        %588 = vdwg.mxu0
        %v593 = vunpack.c.l.b16 %v454
        %v594 = vunpack.c.l.b16 %v455
        %v595 = vunpack.c.l.b16 %v456
        %v596 = vunpack.c.l.b16 %v457
        %v597 = vpack.c.b16 %v594, %v593
        %v598 = vpack.c.b16 %v596, %v595
        %v601 = vunpack.c.l.b16 %v458
        %v602 = vunpack.c.l.b16 %v459
        %v603 = vpack.c.b16 %v602, %v601
        %vm605 = vcmask 130048
        %v607 = vsel %vm605, %v597, 0
        %v610 = vsel %vm605, %v598, 0
        %612 = vmatprep.subr.bf16.mxu0 0
        %613 = vmatpush1.bf16.msra.mxu0 %v603
        %614 = vmatprep.subr.bf16.mxu0 0
        %615 = vmatpush1.bf16.msra.mxu0 0
        %616 = vmatprep.subr.bf16.mxu0 0
        %617 = vmatpush1.bf16.msra.mxu0 0
        %618 = vmatprep.subr.bf16.mxu0 0
        %619 = vmatpush1.bf16.msra.mxu0 0
        %620 = vmatprep.subr.bf16.mxu0 0
        %621 = vmatpush1.bf16.msra.mxu0 0
        %622 = vmatprep.subr.bf16.mxu0 0
        %623 = vmatpush1.bf16.msra.mxu0 0
        %624 = vmatprep.subr.bf16.mxu0 0
        %625 = vmatpush1.bf16.msra.mxu0 0
        %626 = vmatprep.subr.bf16.mxu0 0
        %627 = vmatpush1.bf16.msra.mxu0 0
        %628 = vmatprep.subr.bf16.mxu0 0
        %629 = vmatpush1.bf16.msra.mxu0 0
        %630 = vmatprep.subr.bf16.mxu0 0
        %631 = vmatpush1.bf16.msra.mxu0 0
        %632 = vmatprep.subr.bf16.mxu0 0
        %633 = vmatpush1.bf16.msra.mxu0 0
        %634 = vmatprep.subr.bf16.mxu0 0
        %635 = vmatpush1.bf16.msra.mxu0 0
        %636 = vmatprep.subr.bf16.mxu0 0
        %637 = vmatpush1.bf16.msra.mxu0 0
        %638 = vmatprep.subr.bf16.mxu0 0
        %639 = vmatpush1.bf16.msra.mxu0 0
        %640 = vmatprep.subr.bf16.mxu0 0
        %641 = vmatpush1.bf16.msra.mxu0 0
        %642 = vmatprep.subr.bf16.mxu0 0
        %643 = vmatpush1.bf16.msra.mxu0 0
        %644 = vmatprep.mubr.bf16.mxu0 0
        %645 = vmatmul.mubr.bf16.gmra.mrb[0].mxu0 %v607
        %v646 = vpop.f32.mrb[0].mxu0
        %v647 = vadd.f32 %v575, %v646
        %v648 = vpop.f32.mrb[0].mxu0
        %v649 = vpop.f32.mrb[0].mxu0
        %v650 = vadd.f32 %v578, %v649
        %v651 = vpop.f32.mrb[0].mxu0
        %652 = vmatprep.mubr.bf16.mxu0 0
        %653 = vmatmul.mubr.bf16.gmra.mrb[0].mxu0 %v610
        %v654 = vpop.f32.mrb[0].mxu0
        %v655 = vadd.f32 %v583, %v654
        %v656 = vpop.f32.mrb[0].mxu0
        %v657 = vpop.f32.mrb[0].mxu0
        %v658 = vadd.f32 %v586, %v657
        %v659 = vpop.f32.mrb[0].mxu0
        %660 = vdwg.mxu0
        %v661 = vld [vmem:[#allocation9] sm:$0xf]
        %v662 = vld [vmem:[#allocation9 + $0x4] sm:$0xf]
        %v663 = vld [vmem:[#allocation9 + $0x8] sm:$0xf]
        %v664 = vld [vmem:[#allocation9 + $0xc] sm:$0xf]
        %v665 = vld [vmem:[%s406] sm:$0xf]
        %v666 = vld [vmem:[%s406 + $0x4] sm:$0xf]
        %v667 = vld [vmem:[%s406 + $0x8] sm:$0xf]
        %v668 = vld [vmem:[%s406 + $0xc] sm:$0xf]
        %v669 = vld [vmem:[%s406 + $0x10] sm:$0xf]
        %v670 = vld [vmem:[%s406 + $0x14] sm:$0xf]
        %v671 = vld [vmem:[%s406 + $0x18] sm:$0xf]
        %v672 = vld [vmem:[%s406 + $0x1c] sm:$0xf]
        %v677 = vunpack.c.l.b16 %v661
        %v678 = vunpack.c.l.b16 %v662
        %v679 = vunpack.c.l.b16 %v663
        %v680 = vunpack.c.l.b16 %v664
        %v681 = vpack.c.b16 %v678, %v677
        %v682 = vpack.c.b16 %v680, %v679
        %v691 = vunpack.c.l.b16 %v665
        %v692 = vunpack.c.l.b16 %v666
        %v693 = vunpack.c.l.b16 %v667
        %v694 = vunpack.c.l.b16 %v668
        %v695 = vunpack.c.l.b16 %v669
        %v696 = vunpack.c.l.b16 %v670
        %v697 = vunpack.c.l.b16 %v671
        %v698 = vunpack.c.l.b16 %v672
        %v699 = vpack.c.b16 %v692, %v691
        %v700 = vpack.c.b16 %v694, %v693
        %v701 = vpack.c.b16 %v696, %v695
        %v702 = vpack.c.b16 %v698, %v697
        %vm707 = vcmask 523264
        %v709 = vsel %vm707, %v681, 0
        %v712 = vsel %vm707, %v682, 0
        %714 = vmatprep.subr.bf16.mxu0 0
        %715 = vmatpush1.bf16.msra.mxu0 %v699
        %716 = vmatprep.subr.bf16.mxu0 0
        %717 = vmatpush1.bf16.msra.mxu0 %v700
        %718 = vmatprep.subr.bf16.mxu0 0
        %719 = vmatpush1.bf16.msra.mxu0 %v701
        %720 = vmatprep.subr.bf16.mxu0 0
        %721 = vmatpush1.bf16.msra.mxu0 %v702
        %722 = vmatprep.subr.bf16.mxu0 0
        %723 = vmatpush1.bf16.msra.mxu0 0
        %724 = vmatprep.subr.bf16.mxu0 0
        %725 = vmatpush1.bf16.msra.mxu0 0
        %726 = vmatprep.subr.bf16.mxu0 0
        %727 = vmatpush1.bf16.msra.mxu0 0
        %728 = vmatprep.subr.bf16.mxu0 0
        %729 = vmatpush1.bf16.msra.mxu0 0
        %730 = vmatprep.subr.bf16.mxu0 0
        %731 = vmatpush1.bf16.msra.mxu0 0
        %732 = vmatprep.subr.bf16.mxu0 0
        %733 = vmatpush1.bf16.msra.mxu0 0
        %734 = vmatprep.subr.bf16.mxu0 0
        %735 = vmatpush1.bf16.msra.mxu0 0
        %736 = vmatprep.subr.bf16.mxu0 0
        %737 = vmatpush1.bf16.msra.mxu0 0
        %738 = vmatprep.subr.bf16.mxu0 0
        %739 = vmatpush1.bf16.msra.mxu0 0
        %740 = vmatprep.subr.bf16.mxu0 0
        %741 = vmatpush1.bf16.msra.mxu0 0
        %742 = vmatprep.subr.bf16.mxu0 0
        %743 = vmatpush1.bf16.msra.mxu0 0
        %744 = vmatprep.subr.bf16.mxu0 0
        %745 = vmatpush1.bf16.msra.mxu0 0
        %746 = vmatprep.mubr.bf16.mxu0 0
        %747 = vmatmul.mubr.bf16.gmra.mrb[0].mxu0 %v709
        %v748 = vpop.f32.mrb[0].mxu0
        %v749 = vadd.f32 0.0, %v748
        %v750 = vpop.f32.mrb[0].mxu0
        %v751 = vpop.f32.mrb[0].mxu0
        %v752 = vadd.f32 0.0, %v751
        %v753 = vpop.f32.mrb[0].mxu0
        %754 = vmatprep.mubr.bf16.mxu0 0
        %755 = vmatmul.mubr.bf16.gmra.mrb[0].mxu0 %v712
        %v756 = vpop.f32.mrb[0].mxu0
        %v757 = vadd.f32 0.0, %v756
        %v758 = vpop.f32.mrb[0].mxu0
        %v759 = vpop.f32.mrb[0].mxu0
        %v760 = vadd.f32 0.0, %v759
        %v761 = vpop.f32.mrb[0].mxu0
        %762 = vdwg.mxu0
        %v763 = vadd.f32 %v647, %v749
        %v764 = vadd.f32 %v650, %v752
        %v765 = vadd.f32 %v655, %v757
        %v766 = vadd.f32 %v658, %v760
        %v767 = vld [vmem:[%s6] sm:$0xff]
        %v768 = vld [vmem:[%s6 + $0x8] sm:$0xff]
        %v769 = vld [vmem:[%s6 + $0x10] sm:$0xff]
        %v770 = vld [vmem:[%s6 + $0x18] sm:$0xff]
        %772 = vset.pattern.permute.xlu0 0
        %773 = vperm.xlu0 %772, %v767
        %v774 = vpop.permute.xlu0 %773
        %777 = vset.pattern.permute.xlu0 0
        %778 = vperm.xlu0 %777, %v768
        %v779 = vpop.permute.xlu0 %778
        %782 = vset.pattern.permute.xlu0 0
        %783 = vperm.xlu0 %782, %v769
        %v784 = vpop.permute.xlu0 %783
        %787 = vset.pattern.permute.xlu0 0
        %788 = vperm.xlu0 %787, %v770
        %v789 = vpop.permute.xlu0 %788
        %v791 = vadd.f32 %v763, %v774
        %v792 = vadd.f32 %v764, %v779
        %v793 = vadd.f32 %v765, %v784
        %v794 = vadd.f32 %v766, %v789
        %v795 = vmax.f32 %v791, 0.0
        %v796 = vmax.f32 %v792, 0.0
        %v797 = vmax.f32 %v793, 0.0
        %v798 = vmax.f32 %v794, 0.0
        %v799 = vpack.c.bf16 %v796, %v795
        %v800 = vpack.c.bf16 %v798, %v797
        %v803 = vunpack.c.l.b16 %v799
        %v804 = vunpack.c.h.b16 %v799
        %v805 = vunpack.c.l.b16 %v800
        %v806 = vunpack.c.h.b16 %v800
        %v807 = vpack.c.b16 %v803, %v803
        %v808 = vpack.c.b16 %v804, %v804
        %v809 = vpack.c.b16 %v805, %v805
        %v810 = vpack.c.b16 %v806, %v806
        %815 = vst [vmem:[%s452] sm:$0xf] %v807
        %816 = vst [vmem:[%s452 + $0x4] sm:$0xf] %v808
        %817 = vst [vmem:[%s452 + $0x8] sm:$0xf] %v809
        %818 = vst [vmem:[%s452 + $0xc] sm:$0xf] %v810
        %s819 = sand.u32 %s198, 1
        %s820 = scalar_lea.sflag [#allocation4], %s819
        %s821 = sand.u32 %s198, 1
        %s822 = smul.addr %s821, 16
        %s823 = scalar_lea.vmem [#allocation11], %s822
        // Predicated region
        $region106: #{tpu_custom_call.1} parent=84 // pred_check
          %p824 = pneg %p208
        $region107: #{tpu_custom_call.1} parent=84 // pred_check_branch
          %826 = sbr.rel (%p824) target = $region109
        $region108: #{tpu_custom_call.1} parent=84 // pred_region
          %s828 = ssub.s32 256, 256
          %829 = vsyncadd %s820, %s828
          %s830 = smul.addr %s28, 64
          %s831 = scalar_lea.hbm %s7, %s830
          %s832 = sshll.u32 %s823, 4
          %s833 = int_to_ptr.vmem [resolvable:$true] %s832
          %838 = dma.vmem_to_hbm [thread:$0]  %s833, 256, %s831, %s820, 64, 128, 4
        $region109: #{tpu_custom_call.1} parent=84 // pred_fallthru
          _
      $region85: #{tpu_custom_call.1} parent=5 // pred_fallthru
        _
      %p839 = scmp.le.s32.totalorder 2, %s23
      // Predicated region
      $region110: #{tpu_custom_call.1} parent=5 // pred_check
        %p840 = pneg %p839
      $region111: #{tpu_custom_call.1} parent=5 // pred_check_branch
        %842 = sbr.rel (%p840) target = $region113
      $region112: #{tpu_custom_call.1} parent=5 // pred_region
        %s843 = ssub.s32 %s23, 2
        // Predicated region
        $region114: #{tpu_custom_call.1} parent=112 // pred_check
          %p844 = pneg %p214
        $region115: #{tpu_custom_call.1} parent=112 // pred_check_branch
          %846 = sbr.rel (%p844) target = $region117
        $region116: #{tpu_custom_call.1} parent=112 // pred_region
          %s847 = sand.u32 %s199, 1
          %s848 = scalar_lea.sflag [#allocation4], %s847
          %s849 = sand.u32 %s199, 1
          %s850 = smul.addr %s849, 16
          %s851 = scalar_lea.vmem [#allocation11], %s850
          %852 = dma.done %s848, 256
        $region117: #{tpu_custom_call.1} parent=112 // pred_fallthru
          _
      $region113: #{tpu_custom_call.1} parent=5 // pred_fallthru
        _
    $region6: #{tpu_custom_call.1} parent=1 // loop_footer
      %s27 = sadd.s32 1, %s23
    $region7: #{tpu_custom_call.1} parent=1 // loop_footer_branch
      %22 = sbr.rel target = $region3
    $region8: #{tpu_custom_call.1} parent=1 // loop_exit
      _
    %853 = vsyncpa [#allocation3], 1
    %s854 = scalar_lea.sflag [#allocation3], 1
    %855 = vsyncpa %s854, 1
    %856 = vsyncpa [#allocation6], 1
    %s857 = scalar_lea.sflag [#allocation6], 1
    %858 = vsyncpa %s857, 1
    %859 = vsyncpa [#allocation10], 1
    %860 = vsyncpa [#allocation4], 1
    %s861 = scalar_lea.sflag [#allocation4], 1
    %862 = vsyncpa %s861, 1

</llo_original>
